<compile_context>
chip_gen: v7x
topology: tpu7x:2x2x1
jax: 0.10.0
libtpu: 0.0.40
codegen_flags: <defaults>
</compile_context>

<pallas_src>
import jax
import jax.numpy as jnp
from jax import lax
from jax.experimental import pallas as pl
from jax.experimental.pallas import tpu as pltpu


def transfer_kernel(x_ref, w1_ref, b1_ref, w2_ref, b2_ref, out_ref):
    # x_ref:  (B, C_in, HW)    f32  NCHW with H,W flattened (no wrapper transpose)
    # w1_ref: (C_feat, C_in)   backbone stand-in 1x1-conv weight (out, in)
    # b1_ref: (C_feat, 1)      backbone stand-in bias (column -> lane broadcast)
    # w2_ref: (C_feat, NCP)    classifier weight.T, pre-scaled by 1/HW, zero-padded
    # b2_ref: (1, NCP)         classifier bias, padded classes hold -1e30
    # out_ref:(B, NCP)         log-probabilities (padded classes sliced by wrapper)
    B, _, HW = x_ref.shape
    N = B * HW

    x = x_ref[...]
    w1 = w1_ref[...]
    b1 = b1_ref[...]

    # ---- backbone stand-in: 1x1 conv + ReLU as ONE lane-dense 2D MXU matmul ----
    # Stack batch images along the lane axis: (C_feat, C_in) @ (C_in, B*HW).
    x_wide = jnp.concatenate([x[b] for b in range(B)], axis=1)        # (C_in, B*HW)
    fm = jnp.dot(w1, x_wide, preferred_element_type=jnp.float32) + b1
    fm = jnp.maximum(fm, 0.0)                                         # (C_feat, B*HW)

    # ---- global average pool per image (1/HW folded into w2 by the wrapper) ----
    # One matmul against a block one-hot selector keeps everything on the MXU
    # and avoids any thin transpose/relayout of activations.
    r = lax.broadcasted_iota(jnp.int32, (N, B), 0)
    c = lax.broadcasted_iota(jnp.int32, (N, B), 1)
    sel = ((r >= c * HW) & (r < (c + 1) * HW)).astype(jnp.float32)    # (B*HW, B)
    fv_cols = jnp.dot(fm, sel, preferred_element_type=jnp.float32)    # (C_feat, B)

    # ---- linear classifier: contract over C_feat (pooled features as lhs^T) ----
    logits = lax.dot_general(
        fv_cols, w2_ref[...], (((0,), (0,)), ((), ())),
        preferred_element_type=jnp.float32) + b2_ref[...]             # (B, NCP)

    # ---- numerically stable log_softmax along the lane-dense class axis ----
    m = jnp.max(logits, axis=-1, keepdims=True)
    z = logits - m
    lse = jnp.log(jnp.sum(jnp.exp(z), axis=-1, keepdims=True))
    out_ref[...] = z - lse


def transfer_forward(x_nchw, conv_w, conv_b, fc_w, fc_b):
    """Transfer.forward: log_softmax(linear(avg_pool(backbone(x))))."""
    B, C_in, H, W = x_nchw.shape
    HW = H * W
    C_feat = conv_w.shape[0]
    num_class = fc_w.shape[0]
    NCP = pl.cdiv(max(num_class, 128), 128) * 128     # pad classes to lane multiple

    # Free reshape of row-major NCHW -> (B, C_in, HW); no transpose, no HBM copy.
    x = x_nchw.reshape(B, C_in, HW)

    w1 = conv_w.reshape(C_feat, C_in)
    b1 = conv_b.reshape(C_feat, 1)

    # Fold 1/(H*W) pool scale into the classifier weight; pad class dim with
    # zero weights and -1e30 biases so padded logits vanish in the normalizer.
    w2 = jnp.pad(fc_w.T / HW, ((0, 0), (0, NCP - num_class)))
    b2 = jnp.pad(fc_b.reshape(1, num_class), ((0, 0), (0, NCP - num_class)),
                 constant_values=-1e30)

    vmem = pl.BlockSpec(memory_space=pltpu.MemorySpace.VMEM)
    flops = (2 * C_feat * C_in * B * HW          # backbone matmul
             + 2 * C_feat * B * HW * B           # pooling selector matmul
             + 2 * B * C_feat * NCP)             # classifier matmul
    bytes_accessed = 4 * (B * C_in * HW + C_feat * C_in + C_feat
                          + C_feat * NCP + NCP + B * NCP)

    out_padded = pl.pallas_call(
        transfer_kernel,
        out_shape=jax.ShapeDtypeStruct((B, NCP), jnp.float32),
        in_specs=[vmem, vmem, vmem, vmem, vmem],
        out_specs=vmem,
        compiler_params=pltpu.CompilerParams(vmem_limit_bytes=4 * 1024 * 1024),
        cost_estimate=pl.CostEstimate(flops=flops,
                                      transcendentals=B * NCP + B,
                                      bytes_accessed=bytes_accessed),
    )(x, w1, b1, w2, b2)

    return out_padded[:, :num_class]


def transfer_reference(x_nchw, conv_w, conv_b, fc_w, fc_b):
    """Pure-JAX reference of the same forward pass (for correctness checking)."""
    fm = jnp.einsum("oc,bchw->bohw", conv_w, x_nchw) + conv_b[None, :, None, None]
    fm = jnp.maximum(fm, 0.0)
    fv = jnp.mean(fm, axis=(2, 3))
    logits = fv @ fc_w.T + fc_b[None, :]
    return jax.nn.log_softmax(logits, axis=-1)


if __name__ == "__main__":
    # Shapes consistent with the module (resnet=False -> num_channel=64).
    B, C_in, H, W = 2, 3, 16, 16
    num_channel = 64
    num_class = 100

    key = jax.random.PRNGKey(0)
    kx, kw1, kb1, kw2, kb2 = jax.random.split(key, 5)

    x = jax.random.normal(kx, (B, C_in, H, W), dtype=jnp.float32)

    # Deterministic synthetic parameters (PyTorch-style layouts).
    conv_w = jax.random.normal(kw1, (num_channel, C_in), dtype=jnp.float32) * 0.1
    conv_b = jax.random.normal(kb1, (num_channel,), dtype=jnp.float32) * 0.01
    fc_w = jax.random.normal(kw2, (num_class, num_channel), dtype=jnp.float32) * 0.1
    fc_b = jax.random.normal(kb2, (num_class,), dtype=jnp.float32) * 0.01

    fwd = jax.jit(transfer_forward)
    log_pred = jax.block_until_ready(fwd(x, conv_w, conv_b, fc_w, fc_b))

    ref = transfer_reference(x, conv_w, conv_b, fc_w, fc_b)

    assert log_pred.shape == (B, num_class)
    # rows of exp(log_pred) must sum to ~1 (padded classes contribute exactly 0)
    assert jnp.allclose(jnp.sum(jnp.exp(log_pred), axis=1), 1.0, atol=1e-4)
    # matches the pure-JAX reference
    assert jnp.allclose(log_pred, ref, atol=5e-3, rtol=5e-3)

    print("KERNEL_OK")
</pallas_src>

<mosaic_0001>
module attributes {stable_mosaic.version = 11 : i64} {
  func.func @transfer_kernel(%arg0: memref<2x3x256xf32, #tpu.memory_space<vmem>>, %arg1: memref<64x3xf32, #tpu.memory_space<vmem>>, %arg2: memref<64x1xf32, #tpu.memory_space<vmem>>, %arg3: memref<64x128xf32, #tpu.memory_space<vmem>>, %arg4: memref<1x128xf32, #tpu.memory_space<vmem>>, %arg5: memref<2x128xf32, #tpu.memory_space<vmem>>) attributes {dimension_semantics = [], scalar_prefetch = 0 : i64, scratch_operands = 0 : i64, tpu.core_type = #tpu.core_type<tc>} {
    %c0 = arith.constant 0 : index
    %c0_0 = arith.constant 0 : index
    %c0_1 = arith.constant 0 : index
    %0 = vector.load %arg0[%c0, %c0_0, %c0_1] : memref<2x3x256xf32, #tpu.memory_space<vmem>>, vector<2x3x256xf32>
    %c0_2 = arith.constant 0 : index
    %c0_3 = arith.constant 0 : index
    %1 = vector.load %arg1[%c0_2, %c0_3] : memref<64x3xf32, #tpu.memory_space<vmem>>, vector<64x3xf32>
    %c0_4 = arith.constant 0 : index
    %c0_5 = arith.constant 0 : index
    %2 = vector.load %arg2[%c0_4, %c0_5] : memref<64x1xf32, #tpu.memory_space<vmem>>, vector<64x1xf32>
    %3 = vector.extract_strided_slice %0 {offsets = [0, 0, 0], sizes = [1, 3, 256], strides = [1, 1, 1]} : vector<2x3x256xf32> to vector<1x3x256xf32>
    %4 = vector.shape_cast %3 : vector<1x3x256xf32> to vector<3x256xf32>
    %5 = vector.extract_strided_slice %0 {offsets = [1, 0, 0], sizes = [1, 3, 256], strides = [1, 1, 1]} : vector<2x3x256xf32> to vector<1x3x256xf32>
    %6 = vector.shape_cast %5 : vector<1x3x256xf32> to vector<3x256xf32>
    %7 = tpu.concatenate %4, %6 in 1 : vector<3x256xf32>, vector<3x256xf32> -> vector<3x512xf32>
    %cst = arith.constant dense<0.000000e+00> : vector<64x512xf32>
    %8 = tpu.matmul %1, %7, %cst {dimension_numbers = #tpu.dot_dimension_numbers<[1], [0], [0], [1], [0, 0, 1, 1], [], []>} : vector<64x3xf32>, vector<3x512xf32>, vector<64x512xf32> -> vector<64x512xf32>
    %9 = vector.broadcast %2 : vector<64x1xf32> to vector<64x512xf32>
    %10 = arith.addf %8, %9 : vector<64x512xf32>
    %cst_6 = arith.constant 0.000000e+00 : f32
    %11 = vector.broadcast %cst_6 : f32 to vector<64x512xf32>
    %12 = arith.maximumf %10, %11 : vector<64x512xf32>
    %13 = tpu.iota {dimensions = array<i32: 0>} : vector<512x2xi32>
    %14 = tpu.iota {dimensions = array<i32: 1>} : vector<512x2xi32>
    %c256_i32 = arith.constant 256 : i32
    %15 = vector.broadcast %c256_i32 : i32 to vector<512x2xi32>
    %16 = arith.muli %14, %15 : vector<512x2xi32>
    %17 = arith.cmpi sge, %13, %16 : vector<512x2xi32>
    %c1_i32 = arith.constant 1 : i32
    %18 = vector.broadcast %c1_i32 : i32 to vector<512x2xi32>
    %19 = arith.addi %14, %18 : vector<512x2xi32>
    %c256_i32_7 = arith.constant 256 : i32
    %20 = vector.broadcast %c256_i32_7 : i32 to vector<512x2xi32>
    %21 = arith.muli %19, %20 : vector<512x2xi32>
    %22 = arith.cmpi slt, %13, %21 : vector<512x2xi32>
    %23 = arith.andi %17, %22 : vector<512x2xi1>
    %24 = arith.extui %23 : vector<512x2xi1> to vector<512x2xi32>
    %25 = arith.sitofp %24 : vector<512x2xi32> to vector<512x2xf32>
    %cst_8 = arith.constant dense<0.000000e+00> : vector<64x2xf32>
    %26 = tpu.matmul %12, %25, %cst_8 {dimension_numbers = #tpu.dot_dimension_numbers<[1], [0], [0], [1], [0, 0, 1, 1], [], []>} : vector<64x512xf32>, vector<512x2xf32>, vector<64x2xf32> -> vector<64x2xf32>
    %c0_9 = arith.constant 0 : index
    %c0_10 = arith.constant 0 : index
    %27 = vector.load %arg3[%c0_9, %c0_10] : memref<64x128xf32, #tpu.memory_space<vmem>>, vector<64x128xf32>
    %cst_11 = arith.constant dense<0.000000e+00> : vector<2x128xf32>
    %28 = tpu.matmul %26, %27, %cst_11 {dimension_numbers = #tpu.dot_dimension_numbers<[0], [0], [1], [1], [0, 1, 1, 1], [], []>} : vector<64x2xf32>, vector<64x128xf32>, vector<2x128xf32> -> vector<2x128xf32>
    %c0_12 = arith.constant 0 : index
    %c0_13 = arith.constant 0 : index
    %29 = vector.load %arg4[%c0_12, %c0_13] : memref<1x128xf32, #tpu.memory_space<vmem>>, vector<1x128xf32>
    %30 = vector.broadcast %29 : vector<1x128xf32> to vector<2x128xf32>
    %31 = arith.addf %28, %30 : vector<2x128xf32>
    %cst_14 = arith.constant dense<0xFF800000> : vector<2xf32>
    %32 = vector.multi_reduction <maximumf>, %31, %cst_14 [1] : vector<2x128xf32> to vector<2xf32>
    %33 = vector.shape_cast %32 : vector<2xf32> to vector<2x1xf32>
    %34 = vector.broadcast %33 : vector<2x1xf32> to vector<2x128xf32>
    %35 = arith.subf %31, %34 : vector<2x128xf32>
    %36 = math.exp %35 : vector<2x128xf32>
    %cst_15 = arith.constant dense<0.000000e+00> : vector<2xf32>
    %37 = vector.multi_reduction <add>, %36, %cst_15 [1] : vector<2x128xf32> to vector<2xf32>
    %38 = vector.shape_cast %37 : vector<2xf32> to vector<2x1xf32>
    %39 = math.log %38 : vector<2x1xf32>
    %40 = vector.broadcast %39 : vector<2x1xf32> to vector<2x128xf32>
    %41 = arith.subf %35, %40 : vector<2x128xf32>
    %c0_16 = arith.constant 0 : index
    %c0_17 = arith.constant 0 : index
    %42 = vector.load %arg5[%c0_16, %c0_17] : memref<2x128xf32, #tpu.memory_space<vmem>>, vector<2x128xf32>
    tpu.vector_store %arg5[%c0_16, %c0_17], %41 {strides = array<i32>} : memref<2x128xf32, #tpu.memory_space<vmem>>, vector<2x128xf32>,
    return
  }
}

</mosaic_0001>

<llo_original>
// kernel: transfer_forward.1
$region0: #{transfer_forward.1}
  #allocation0 [shape = 'u32[]', space=smem, size = 0x4, offset = 0x4, fixed_abs, tag = 'smem constant byte address 0x4 - core index']
  #allocation1 [shape = 'u32[144,128]{1,0:T(1,128)}', space=vmem, size = 0x12000, scoped, tag = 'internal scratch']
  %s0 = inlined_call_operand.vmem [shape: f32[2,3,256], index: 0, kind: input, shape index: {}]
  %s1 = inlined_call_operand.vmem [shape: f32[64,3], index: 1, kind: input, shape index: {}]
  %s2 = inlined_call_operand.vmem [shape: f32[64,1], index: 2, kind: input, shape index: {}]
  %s3 = inlined_call_operand.vmem [shape: f32[64,128], index: 3, kind: input, shape index: {}]
  %s4 = inlined_call_operand.vmem [shape: f32[1,128], index: 4, kind: input, shape index: {}]
  %s5 = inlined_call_operand.hbm [shape: f32[2,128], index: 5, kind: output, shape index: {}]
  %s6 = sld [smem:[#allocation0]]
  $region30: #{transfer_forward.1} parent=0
    _
  %s8 = ssub.s32 1, %s6
  %s9 = scalar_select 0, %s8, %s6
  $region1: #{transfer_forward.1} parent=0
    #allocation2 [shape = 'u8[1024]{0}', space=vmem, size = 0x400, scoped, tag = 'output window, operand 0, single buffered']
    #allocation3 [shape = 's32[1]{0}', space=sflag, size = 0x4, scoped, tag = 'scoped memory for transfer_forward.1']
    %10 = vsyncpa [#allocation3], 0
    // Predicated region
    $region2: #{transfer_forward.1} parent=1 // pred_check
      _
    $region3: #{transfer_forward.1} parent=1 // pred_check_branch
      %12 = sbr.rel (0) target = $region5
    $region4: #{transfer_forward.1} parent=1 // pred_region
      _
    $region5: #{transfer_forward.1} parent=1 // pred_fallthru
      _
    // Predicated region
    $region6: #{transfer_forward.1} parent=1 // pred_check
      _
    $region7: #{transfer_forward.1} parent=1 // pred_check_branch
      %14 = sbr.rel (0) target = $region9
    $region8: #{transfer_forward.1} parent=1 // pred_region
      _
    $region9: #{transfer_forward.1} parent=1 // pred_fallthru
      _
    // Predicated region
    $region10: #{transfer_forward.1} parent=1 // pred_check
      _
    $region11: #{transfer_forward.1} parent=1 // pred_check_branch
      %16 = sbr.rel (0) target = $region13
    $region12: #{transfer_forward.1} parent=1 // pred_region
      _
    $region13: #{transfer_forward.1} parent=1 // pred_fallthru
      _
    // Predicated region
    $region14: #{transfer_forward.1} parent=1 // pred_check
      _
    $region15: #{transfer_forward.1} parent=1 // pred_check_branch
      %18 = sbr.rel (0) target = $region17
    $region16: #{transfer_forward.1} parent=1 // pred_region
      _
    $region17: #{transfer_forward.1} parent=1 // pred_fallthru
      _
    // Predicated region
    $region18: #{transfer_forward.1} parent=1 // pred_check
      _
    $region19: #{transfer_forward.1} parent=1 // pred_check_branch
      %20 = sbr.rel (0) target = $region21
    $region20: #{transfer_forward.1} parent=1 // pred_region
      _
    $region21: #{transfer_forward.1} parent=1 // pred_fallthru
      _
    %v21 = vld [vmem:[%s0] sm:$0x77]
    %v22 = vld [vmem:[%s0 + $0x8] sm:$0x77]
    %v23 = vld [vmem:[%s1] sm:$0xff]
    %v24 = vld [vmem:[%s1 + $0x8] sm:$0xff]
    %v25 = vld [vmem:[%s1 + $0x10] sm:$0xff]
    %v26 = vld [vmem:[%s1 + $0x18] sm:$0xff]
    %v27 = vld [vmem:[%s1 + $0x20] sm:$0xff]
    %v28 = vld [vmem:[%s1 + $0x28] sm:$0xff]
    %v29 = vld [vmem:[%s1 + $0x30] sm:$0xff]
    %v30 = vld [vmem:[%s1 + $0x38] sm:$0xff]
    %v31 = vld [vmem:[%s2] sm:$0xff]
    %v32 = vld [vmem:[%s2 + $0x8] sm:$0xff]
    %v33 = vld [vmem:[%s2 + $0x10] sm:$0xff]
    %v34 = vld [vmem:[%s2 + $0x18] sm:$0xff]
    %v35 = vld [vmem:[%s2 + $0x20] sm:$0xff]
    %v36 = vld [vmem:[%s2 + $0x28] sm:$0xff]
    %v37 = vld [vmem:[%s2 + $0x30] sm:$0xff]
    %v38 = vld [vmem:[%s2 + $0x38] sm:$0xff]
    %v40 = vcombine.high %v21, %v21
    %v42 = vcombine.high %v22, %v22
    %44 = vset.pattern.permute.xlu0 0
    %45 = vperm.xlu0 %44, %v31
    %v46 = vpop.permute.xlu0 %45
    %49 = vset.pattern.permute.xlu0 0
    %50 = vperm.xlu0 %49, %v32
    %v51 = vpop.permute.xlu0 %50
    %54 = vset.pattern.permute.xlu0 0
    %55 = vperm.xlu0 %54, %v33
    %v56 = vpop.permute.xlu0 %55
    %59 = vset.pattern.permute.xlu0 0
    %60 = vperm.xlu0 %59, %v34
    %v61 = vpop.permute.xlu0 %60
    %64 = vset.pattern.permute.xlu0 0
    %65 = vperm.xlu0 %64, %v35
    %v66 = vpop.permute.xlu0 %65
    %69 = vset.pattern.permute.xlu0 0
    %70 = vperm.xlu0 %69, %v36
    %v71 = vpop.permute.xlu0 %70
    %74 = vset.pattern.permute.xlu0 0
    %75 = vperm.xlu0 %74, %v37
    %v76 = vpop.permute.xlu0 %75
    %79 = vset.pattern.permute.xlu0 0
    %80 = vperm.xlu0 %79, %v38
    %v81 = vpop.permute.xlu0 %80
    %vm83 = vcmask 23552
    %v85 = vsel %vm83, %v23, 0
    %v88 = vsel %vm83, %v24, 0
    %v91 = vsel %vm83, %v25, 0
    %v94 = vsel %vm83, %v26, 0
    %v97 = vsel %vm83, %v27, 0
    %v100 = vsel %vm83, %v28, 0
    %v103 = vsel %vm83, %v29, 0
    %v106 = vsel %vm83, %v30, 0
    %vm108 = vcmask 1042432
    %v109 = vsel %vm108, %v21, 0
    %v111 = vsel %vm108, %v40, 0
    %v113 = vsel %vm108, %v22, 0
    %v115 = vsel %vm108, %v42, 0
    %117 = vmatprep.subr.mxu0 %v111
    %118 = vmatpush1.msra.mxu0 %v109
    %119 = vmatprep.subr.mxu0 0.0
    %120 = vmatpush1.msra.mxu0 0.0
    %121 = vmatprep.subr.mxu0 0.0
    %122 = vmatpush1.msra.mxu0 0.0
    %123 = vmatprep.subr.mxu0 0.0
    %124 = vmatpush1.msra.mxu0 0.0
    %125 = vmatprep.subr.mxu0 0.0
    %126 = vmatpush1.msra.mxu0 0.0
    %127 = vmatprep.subr.mxu0 0.0
    %128 = vmatpush1.msra.mxu0 0.0
    %129 = vmatprep.subr.mxu0 0.0
    %130 = vmatpush1.msra.mxu0 0.0
    %131 = vmatprep.subr.mxu0 0.0
    %132 = vmatpush1.msra.mxu0 0.0
    %133 = vmatprep.subr.mxu0 0.0
    %134 = vmatpush1.msra.mxu0 0.0
    %135 = vmatprep.subr.mxu0 0.0
    %136 = vmatpush1.msra.mxu0 0.0
    %137 = vmatprep.subr.mxu0 0.0
    %138 = vmatpush1.msra.mxu0 0.0
    %139 = vmatprep.subr.mxu0 0.0
    %140 = vmatpush1.msra.mxu0 0.0
    %141 = vmatprep.subr.mxu0 0.0
    %142 = vmatpush1.msra.mxu0 0.0
    %143 = vmatprep.subr.mxu0 0.0
    %144 = vmatpush1.msra.mxu0 0.0
    %145 = vmatprep.subr.mxu0 0.0
    %146 = vmatpush1.msra.mxu0 0.0
    %147 = vmatprep.subr.mxu0 0.0
    %148 = vmatpush1.msra.mxu0 0.0
    %149 = vmatprep.subr.mxu0 0.0
    %150 = vmatpush1.msra.mxu0 0.0
    %151 = vmatprep.subr.mxu0 0.0
    %152 = vmatpush1.msra.mxu0 0.0
    %153 = vmatprep.subr.mxu0 0.0
    %154 = vmatpush1.msra.mxu0 0.0
    %155 = vmatprep.subr.mxu0 0.0
    %156 = vmatpush1.msra.mxu0 0.0
    %157 = vmatprep.subr.mxu0 0.0
    %158 = vmatpush1.msra.mxu0 0.0
    %159 = vmatprep.subr.mxu0 0.0
    %160 = vmatpush1.msra.mxu0 0.0
    %161 = vmatprep.subr.mxu0 0.0
    %162 = vmatpush1.msra.mxu0 0.0
    %163 = vmatprep.subr.mxu0 0.0
    %164 = vmatpush1.msra.mxu0 0.0
    %165 = vmatprep.subr.mxu0 0.0
    %166 = vmatpush1.msra.mxu0 0.0
    %167 = vmatprep.subr.mxu0 0.0
    %168 = vmatpush1.msra.mxu0 0.0
    %169 = vmatprep.subr.mxu0 0.0
    %170 = vmatpush1.msra.mxu0 0.0
    %171 = vmatprep.subr.mxu0 0.0
    %172 = vmatpush1.msra.mxu0 0.0
    %173 = vmatprep.subr.mxu0 0.0
    %174 = vmatpush1.msra.mxu0 0.0
    %175 = vmatprep.subr.mxu0 0.0
    %176 = vmatpush1.msra.mxu0 0.0
    %177 = vmatprep.subr.mxu0 0.0
    %178 = vmatpush1.msra.mxu0 0.0
    %179 = vmatprep.subr.mxu0 0.0
    %180 = vmatpush1.msra.mxu0 0.0
    %181 = vmatprep.mubr.f32.mxu0 0.0
    %182 = vmatmul.mubr.f32.gmra.mrb[0].mxu0 %v85
    %v183 = vpop.f32.mrb[0].mxu0
    %v184 = vadd.f32 %v46, %v183
    %v185 = vpop.f32.mrb[0].mxu0
    %v186 = vadd.f32 %v46, %v185
    %187 = vmatprep.mubr.f32.mxu0 0.0
    %188 = vmatmul.mubr.f32.gmra.mrb[0].mxu0 %v88
    %v189 = vpop.f32.mrb[0].mxu0
    %v190 = vadd.f32 %v51, %v189
    %v191 = vpop.f32.mrb[0].mxu0
    %v192 = vadd.f32 %v51, %v191
    %193 = vmatprep.mubr.f32.mxu0 0.0
    %194 = vmatmul.mubr.f32.gmra.mrb[0].mxu0 %v91
    %v195 = vpop.f32.mrb[0].mxu0
    %v196 = vadd.f32 %v56, %v195
    %v197 = vpop.f32.mrb[0].mxu0
    %v198 = vadd.f32 %v56, %v197
    %199 = vmatprep.mubr.f32.mxu0 0.0
    %200 = vmatmul.mubr.f32.gmra.mrb[0].mxu0 %v94
    %v201 = vpop.f32.mrb[0].mxu0
    %v202 = vadd.f32 %v61, %v201
    %v203 = vpop.f32.mrb[0].mxu0
    %v204 = vadd.f32 %v61, %v203
    %205 = vmatprep.mubr.f32.mxu0 0.0
    %206 = vmatmul.mubr.f32.gmra.mrb[0].mxu0 %v97
    %v207 = vpop.f32.mrb[0].mxu0
    %v208 = vadd.f32 %v66, %v207
    %v209 = vpop.f32.mrb[0].mxu0
    %v210 = vadd.f32 %v66, %v209
    %211 = vmatprep.mubr.f32.mxu0 0.0
    %212 = vmatmul.mubr.f32.gmra.mrb[0].mxu0 %v100
    %v213 = vpop.f32.mrb[0].mxu0
    %v214 = vadd.f32 %v71, %v213
    %v215 = vpop.f32.mrb[0].mxu0
    %v216 = vadd.f32 %v71, %v215
    %217 = vmatprep.mubr.f32.mxu0 0.0
    %218 = vmatmul.mubr.f32.gmra.mrb[0].mxu0 %v103
    %v219 = vpop.f32.mrb[0].mxu0
    %v220 = vadd.f32 %v76, %v219
    %v221 = vpop.f32.mrb[0].mxu0
    %v222 = vadd.f32 %v76, %v221
    %223 = vmatprep.mubr.f32.mxu0 0.0
    %224 = vmatmul.mubr.f32.gmra.mrb[0].mxu0 %v106
    %v225 = vpop.f32.mrb[0].mxu0
    %v226 = vadd.f32 %v81, %v225
    %v227 = vpop.f32.mrb[0].mxu0
    %v228 = vadd.f32 %v81, %v227
    %229 = vdwg.mxu0
    %230 = vmatprep.subr.mxu0 %v115
    %231 = vmatpush1.msra.mxu0 %v113
    %232 = vmatprep.subr.mxu0 0.0
    %233 = vmatpush1.msra.mxu0 0.0
    %234 = vmatprep.subr.mxu0 0.0
    %235 = vmatpush1.msra.mxu0 0.0
    %236 = vmatprep.subr.mxu0 0.0
    %237 = vmatpush1.msra.mxu0 0.0
    %238 = vmatprep.subr.mxu0 0.0
    %239 = vmatpush1.msra.mxu0 0.0
    %240 = vmatprep.subr.mxu0 0.0
    %241 = vmatpush1.msra.mxu0 0.0
    %242 = vmatprep.subr.mxu0 0.0
    %243 = vmatpush1.msra.mxu0 0.0
    %244 = vmatprep.subr.mxu0 0.0
    %245 = vmatpush1.msra.mxu0 0.0
    %246 = vmatprep.subr.mxu0 0.0
    %247 = vmatpush1.msra.mxu0 0.0
    %248 = vmatprep.subr.mxu0 0.0
    %249 = vmatpush1.msra.mxu0 0.0
    %250 = vmatprep.subr.mxu0 0.0
    %251 = vmatpush1.msra.mxu0 0.0
    %252 = vmatprep.subr.mxu0 0.0
    %253 = vmatpush1.msra.mxu0 0.0
    %254 = vmatprep.subr.mxu0 0.0
    %255 = vmatpush1.msra.mxu0 0.0
    %256 = vmatprep.subr.mxu0 0.0
    %257 = vmatpush1.msra.mxu0 0.0
    %258 = vmatprep.subr.mxu0 0.0
    %259 = vmatpush1.msra.mxu0 0.0
    %260 = vmatprep.subr.mxu0 0.0
    %261 = vmatpush1.msra.mxu0 0.0
    %262 = vmatprep.subr.mxu0 0.0
    %263 = vmatpush1.msra.mxu0 0.0
    %264 = vmatprep.subr.mxu0 0.0
    %265 = vmatpush1.msra.mxu0 0.0
    %266 = vmatprep.subr.mxu0 0.0
    %267 = vmatpush1.msra.mxu0 0.0
    %268 = vmatprep.subr.mxu0 0.0
    %269 = vmatpush1.msra.mxu0 0.0
    %270 = vmatprep.subr.mxu0 0.0
    %271 = vmatpush1.msra.mxu0 0.0
    %272 = vmatprep.subr.mxu0 0.0
    %273 = vmatpush1.msra.mxu0 0.0
    %274 = vmatprep.subr.mxu0 0.0
    %275 = vmatpush1.msra.mxu0 0.0
    %276 = vmatprep.subr.mxu0 0.0
    %277 = vmatpush1.msra.mxu0 0.0
    %278 = vmatprep.subr.mxu0 0.0
    %279 = vmatpush1.msra.mxu0 0.0
    %280 = vmatprep.subr.mxu0 0.0
    %281 = vmatpush1.msra.mxu0 0.0
    %282 = vmatprep.subr.mxu0 0.0
    %283 = vmatpush1.msra.mxu0 0.0
    %284 = vmatprep.subr.mxu0 0.0
    %285 = vmatpush1.msra.mxu0 0.0
    %286 = vmatprep.subr.mxu0 0.0
    %287 = vmatpush1.msra.mxu0 0.0
    %288 = vmatprep.subr.mxu0 0.0
    %289 = vmatpush1.msra.mxu0 0.0
    %290 = vmatprep.subr.mxu0 0.0
    %291 = vmatpush1.msra.mxu0 0.0
    %292 = vmatprep.subr.mxu0 0.0
    %293 = vmatpush1.msra.mxu0 0.0
    %294 = vmatprep.mubr.f32.mxu0 0.0
    %295 = vmatmul.mubr.f32.gmra.mrb[0].mxu0 %v85
    %v296 = vpop.f32.mrb[0].mxu0
    %v297 = vadd.f32 %v46, %v296
    %v298 = vpop.f32.mrb[0].mxu0
    %v299 = vadd.f32 %v46, %v298
    %300 = vmatprep.mubr.f32.mxu0 0.0
    %301 = vmatmul.mubr.f32.gmra.mrb[0].mxu0 %v88
    %v302 = vpop.f32.mrb[0].mxu0
    %v303 = vadd.f32 %v51, %v302
    %v304 = vpop.f32.mrb[0].mxu0
    %v305 = vadd.f32 %v51, %v304
    %306 = vmatprep.mubr.f32.mxu0 0.0
    %307 = vmatmul.mubr.f32.gmra.mrb[0].mxu0 %v91
    %v308 = vpop.f32.mrb[0].mxu0
    %v309 = vadd.f32 %v56, %v308
    %v310 = vpop.f32.mrb[0].mxu0
    %v311 = vadd.f32 %v56, %v310
    %312 = vmatprep.mubr.f32.mxu0 0.0
    %313 = vmatmul.mubr.f32.gmra.mrb[0].mxu0 %v94
    %v314 = vpop.f32.mrb[0].mxu0
    %v315 = vadd.f32 %v61, %v314
    %v316 = vpop.f32.mrb[0].mxu0
    %v317 = vadd.f32 %v61, %v316
    %318 = vmatprep.mubr.f32.mxu0 0.0
    %319 = vmatmul.mubr.f32.gmra.mrb[0].mxu0 %v97
    %v320 = vpop.f32.mrb[0].mxu0
    %v321 = vadd.f32 %v66, %v320
    %v322 = vpop.f32.mrb[0].mxu0
    %v323 = vadd.f32 %v66, %v322
    %324 = vmatprep.mubr.f32.mxu0 0.0
    %325 = vmatmul.mubr.f32.gmra.mrb[0].mxu0 %v100
    %v326 = vpop.f32.mrb[0].mxu0
    %v327 = vadd.f32 %v71, %v326
    %v328 = vpop.f32.mrb[0].mxu0
    %v329 = vadd.f32 %v71, %v328
    %330 = vmatprep.mubr.f32.mxu0 0.0
    %331 = vmatmul.mubr.f32.gmra.mrb[0].mxu0 %v103
    %v332 = vpop.f32.mrb[0].mxu0
    %v333 = vadd.f32 %v76, %v332
    %v334 = vpop.f32.mrb[0].mxu0
    %v335 = vadd.f32 %v76, %v334
    %336 = vmatprep.mubr.f32.mxu0 0.0
    %337 = vmatmul.mubr.f32.gmra.mrb[0].mxu0 %v106
    %v338 = vpop.f32.mrb[0].mxu0
    %v339 = vadd.f32 %v81, %v338
    %v340 = vpop.f32.mrb[0].mxu0
    %v341 = vadd.f32 %v81, %v340
    %342 = vdwg.mxu0
    %v343 = vmax.f32 %v184, 0.0
    %v344 = vmax.f32 %v186, 0.0
    %v345 = vmax.f32 %v297, 0.0
    %v346 = vmax.f32 %v299, 0.0
    %v347 = vmax.f32 %v190, 0.0
    %v348 = vmax.f32 %v192, 0.0
    %v349 = vmax.f32 %v303, 0.0
    %v350 = vmax.f32 %v305, 0.0
    %v351 = vmax.f32 %v196, 0.0
    %v352 = vmax.f32 %v198, 0.0
    %v353 = vmax.f32 %v309, 0.0
    %v354 = vmax.f32 %v311, 0.0
    %v355 = vmax.f32 %v202, 0.0
    %v356 = vmax.f32 %v204, 0.0
    %v357 = vmax.f32 %v315, 0.0
    %v358 = vmax.f32 %v317, 0.0
    %v359 = vmax.f32 %v208, 0.0
    %v360 = vmax.f32 %v210, 0.0
    %v361 = vmax.f32 %v321, 0.0
    %v362 = vmax.f32 %v323, 0.0
    %v363 = vmax.f32 %v214, 0.0
    %v364 = vmax.f32 %v216, 0.0
    %v365 = vmax.f32 %v327, 0.0
    %v366 = vmax.f32 %v329, 0.0
    %v367 = vmax.f32 %v220, 0.0
    %v368 = vmax.f32 %v222, 0.0
    %v369 = vmax.f32 %v333, 0.0
    %v370 = vmax.f32 %v335, 0.0
    %v371 = vmax.f32 %v226, 0.0
    %v372 = vmax.f32 %v228, 0.0
    %v373 = vmax.f32 %v339, 0.0
    %v374 = vmax.f32 %v341, 0.0
    %v375 = vlaneseq
    %v376 = vshrl.u32 %v375, 7
    %v377 = vadd.s32 %v376, 8
    %v378 = vadd.s32 %v376, 16
    %v379 = vadd.s32 %v376, 24
    %v380 = vadd.s32 %v376, 32
    %v381 = vadd.s32 %v376, 40
    %v382 = vadd.s32 %v376, 48
    %v383 = vadd.s32 %v376, 56
    %v384 = vadd.s32 %v376, 64
    %v385 = vadd.s32 %v376, 72
    %v386 = vadd.s32 %v376, 80
    %v387 = vadd.s32 %v376, 88
    %v388 = vadd.s32 %v376, 96
    %v389 = vadd.s32 %v376, 104
    %v390 = vadd.s32 %v376, 112
    %v391 = vadd.s32 %v376, 120
    %v392 = vadd.s32 %v376, 128
    %v393 = vadd.s32 %v376, 136
    %v394 = vadd.s32 %v376, 144
    %v395 = vadd.s32 %v376, 152
    %v396 = vadd.s32 %v376, 160
    %v397 = vadd.s32 %v376, 168
    %v398 = vadd.s32 %v376, 176
    %v399 = vadd.s32 %v376, 184
    %v400 = vadd.s32 %v376, 192
    %v401 = vadd.s32 %v376, 200
    %v402 = vadd.s32 %v376, 208
    %v403 = vadd.s32 %v376, 216
    %v404 = vadd.s32 %v376, 224
    %v405 = vadd.s32 %v376, 232
    %v406 = vadd.s32 %v376, 240
    %v407 = vadd.s32 %v376, 248
    %v408 = vadd.s32 %v376, 256
    %v409 = vadd.s32 %v376, 264
    %v410 = vadd.s32 %v376, 272
    %v411 = vadd.s32 %v376, 280
    %v412 = vadd.s32 %v376, 288
    %v413 = vadd.s32 %v376, 296
    %v414 = vadd.s32 %v376, 304
    %v415 = vadd.s32 %v376, 312
    %v416 = vadd.s32 %v376, 320
    %v417 = vadd.s32 %v376, 328
    %v418 = vadd.s32 %v376, 336
    %v419 = vadd.s32 %v376, 344
    %v420 = vadd.s32 %v376, 352
    %v421 = vadd.s32 %v376, 360
    %v422 = vadd.s32 %v376, 368
    %v423 = vadd.s32 %v376, 376
    %v424 = vadd.s32 %v376, 384
    %v425 = vadd.s32 %v376, 392
    %v426 = vadd.s32 %v376, 400
    %v427 = vadd.s32 %v376, 408
    %v428 = vadd.s32 %v376, 416
    %v429 = vadd.s32 %v376, 424
    %v430 = vadd.s32 %v376, 432
    %v431 = vadd.s32 %v376, 440
    %v432 = vadd.s32 %v376, 448
    %v433 = vadd.s32 %v376, 456
    %v434 = vadd.s32 %v376, 464
    %v435 = vadd.s32 %v376, 472
    %v436 = vadd.s32 %v376, 480
    %v437 = vadd.s32 %v376, 488
    %v438 = vadd.s32 %v376, 496
    %v439 = vadd.s32 %v376, 504
    %v440 = vlaneseq
    %v441 = vand.u32 %v440, 127
    %v442 = vmul.u32 %v441, 256
    %vm443 = vcmp.ge.s32.totalorder %v376, %v442
    %vm444 = vcmp.ge.s32.totalorder %v377, %v442
    %vm445 = vcmp.ge.s32.totalorder %v378, %v442
    %vm446 = vcmp.ge.s32.totalorder %v379, %v442
    %vm447 = vcmp.ge.s32.totalorder %v380, %v442
    %vm448 = vcmp.ge.s32.totalorder %v381, %v442
    %vm449 = vcmp.ge.s32.totalorder %v382, %v442
    %vm450 = vcmp.ge.s32.totalorder %v383, %v442
    %vm451 = vcmp.ge.s32.totalorder %v384, %v442
    %vm452 = vcmp.ge.s32.totalorder %v385, %v442
    %vm453 = vcmp.ge.s32.totalorder %v386, %v442
    %vm454 = vcmp.ge.s32.totalorder %v387, %v442
    %vm455 = vcmp.ge.s32.totalorder %v388, %v442
    %vm456 = vcmp.ge.s32.totalorder %v389, %v442
    %vm457 = vcmp.ge.s32.totalorder %v390, %v442
    %vm458 = vcmp.ge.s32.totalorder %v391, %v442
    %vm459 = vcmp.ge.s32.totalorder %v392, %v442
    %vm460 = vcmp.ge.s32.totalorder %v393, %v442
    %vm461 = vcmp.ge.s32.totalorder %v394, %v442
    %vm462 = vcmp.ge.s32.totalorder %v395, %v442
    %vm463 = vcmp.ge.s32.totalorder %v396, %v442
    %vm464 = vcmp.ge.s32.totalorder %v397, %v442
    %vm465 = vcmp.ge.s32.totalorder %v398, %v442
    %vm466 = vcmp.ge.s32.totalorder %v399, %v442
    %vm467 = vcmp.ge.s32.totalorder %v400, %v442
    %vm468 = vcmp.ge.s32.totalorder %v401, %v442
    %vm469 = vcmp.ge.s32.totalorder %v402, %v442
    %vm470 = vcmp.ge.s32.totalorder %v403, %v442
    %vm471 = vcmp.ge.s32.totalorder %v404, %v442
    %vm472 = vcmp.ge.s32.totalorder %v405, %v442
    %vm473 = vcmp.ge.s32.totalorder %v406, %v442
    %vm474 = vcmp.ge.s32.totalorder %v407, %v442
    %vm475 = vcmp.ge.s32.totalorder %v408, %v442
    %vm476 = vcmp.ge.s32.totalorder %v409, %v442
    %vm477 = vcmp.ge.s32.totalorder %v410, %v442
    %vm478 = vcmp.ge.s32.totalorder %v411, %v442
    %vm479 = vcmp.ge.s32.totalorder %v412, %v442
    %vm480 = vcmp.ge.s32.totalorder %v413, %v442
    %vm481 = vcmp.ge.s32.totalorder %v414, %v442
    %vm482 = vcmp.ge.s32.totalorder %v415, %v442
    %vm483 = vcmp.ge.s32.totalorder %v416, %v442
    %vm484 = vcmp.ge.s32.totalorder %v417, %v442
    %vm485 = vcmp.ge.s32.totalorder %v418, %v442
    %vm486 = vcmp.ge.s32.totalorder %v419, %v442
    %vm487 = vcmp.ge.s32.totalorder %v420, %v442
    %vm488 = vcmp.ge.s32.totalorder %v421, %v442
    %vm489 = vcmp.ge.s32.totalorder %v422, %v442
    %vm490 = vcmp.ge.s32.totalorder %v423, %v442
    %vm491 = vcmp.ge.s32.totalorder %v424, %v442
    %vm492 = vcmp.ge.s32.totalorder %v425, %v442
    %vm493 = vcmp.ge.s32.totalorder %v426, %v442
    %vm494 = vcmp.ge.s32.totalorder %v427, %v442
    %vm495 = vcmp.ge.s32.totalorder %v428, %v442
    %vm496 = vcmp.ge.s32.totalorder %v429, %v442
    %vm497 = vcmp.ge.s32.totalorder %v430, %v442
    %vm498 = vcmp.ge.s32.totalorder %v431, %v442
    %vm499 = vcmp.ge.s32.totalorder %v432, %v442
    %vm500 = vcmp.ge.s32.totalorder %v433, %v442
    %vm501 = vcmp.ge.s32.totalorder %v434, %v442
    %vm502 = vcmp.ge.s32.totalorder %v435, %v442
    %vm503 = vcmp.ge.s32.totalorder %v436, %v442
    %vm504 = vcmp.ge.s32.totalorder %v437, %v442
    %vm505 = vcmp.ge.s32.totalorder %v438, %v442
    %vm506 = vcmp.ge.s32.totalorder %v439, %v442
    %v507 = vadd.s32 %v441, 1
    %v508 = vmul.u32 %v507, 256
    %vm509 = vcmp.lt.s32.totalorder %v376, %v508
    %vm510 = vcmp.lt.s32.totalorder %v377, %v508
    %vm511 = vcmp.lt.s32.totalorder %v378, %v508
    %vm512 = vcmp.lt.s32.totalorder %v379, %v508
    %vm513 = vcmp.lt.s32.totalorder %v380, %v508
    %vm514 = vcmp.lt.s32.totalorder %v381, %v508
    %vm515 = vcmp.lt.s32.totalorder %v382, %v508
    %vm516 = vcmp.lt.s32.totalorder %v383, %v508
    %vm517 = vcmp.lt.s32.totalorder %v384, %v508
    %vm518 = vcmp.lt.s32.totalorder %v385, %v508
    %vm519 = vcmp.lt.s32.totalorder %v386, %v508
    %vm520 = vcmp.lt.s32.totalorder %v387, %v508
    %vm521 = vcmp.lt.s32.totalorder %v388, %v508
    %vm522 = vcmp.lt.s32.totalorder %v389, %v508
    %vm523 = vcmp.lt.s32.totalorder %v390, %v508
    %vm524 = vcmp.lt.s32.totalorder %v391, %v508
    %vm525 = vcmp.lt.s32.totalorder %v392, %v508
    %vm526 = vcmp.lt.s32.totalorder %v393, %v508
    %vm527 = vcmp.lt.s32.totalorder %v394, %v508
    %vm528 = vcmp.lt.s32.totalorder %v395, %v508
    %vm529 = vcmp.lt.s32.totalorder %v396, %v508
    %vm530 = vcmp.lt.s32.totalorder %v397, %v508
    %vm531 = vcmp.lt.s32.totalorder %v398, %v508
    %vm532 = vcmp.lt.s32.totalorder %v399, %v508
    %vm533 = vcmp.lt.s32.totalorder %v400, %v508
    %vm534 = vcmp.lt.s32.totalorder %v401, %v508
    %vm535 = vcmp.lt.s32.totalorder %v402, %v508
    %vm536 = vcmp.lt.s32.totalorder %v403, %v508
    %vm537 = vcmp.lt.s32.totalorder %v404, %v508
    %vm538 = vcmp.lt.s32.totalorder %v405, %v508
    %vm539 = vcmp.lt.s32.totalorder %v406, %v508
    %vm540 = vcmp.lt.s32.totalorder %v407, %v508
    %vm541 = vcmp.lt.s32.totalorder %v408, %v508
    %vm542 = vcmp.lt.s32.totalorder %v409, %v508
    %vm543 = vcmp.lt.s32.totalorder %v410, %v508
    %vm544 = vcmp.lt.s32.totalorder %v411, %v508
    %vm545 = vcmp.lt.s32.totalorder %v412, %v508
    %vm546 = vcmp.lt.s32.totalorder %v413, %v508
    %vm547 = vcmp.lt.s32.totalorder %v414, %v508
    %vm548 = vcmp.lt.s32.totalorder %v415, %v508
    %vm549 = vcmp.lt.s32.totalorder %v416, %v508
    %vm550 = vcmp.lt.s32.totalorder %v417, %v508
    %vm551 = vcmp.lt.s32.totalorder %v418, %v508
    %vm552 = vcmp.lt.s32.totalorder %v419, %v508
    %vm553 = vcmp.lt.s32.totalorder %v420, %v508
    %vm554 = vcmp.lt.s32.totalorder %v421, %v508
    %vm555 = vcmp.lt.s32.totalorder %v422, %v508
    %vm556 = vcmp.lt.s32.totalorder %v423, %v508
    %vm557 = vcmp.lt.s32.totalorder %v424, %v508
    %vm558 = vcmp.lt.s32.totalorder %v425, %v508
    %vm559 = vcmp.lt.s32.totalorder %v426, %v508
    %vm560 = vcmp.lt.s32.totalorder %v427, %v508
    %vm561 = vcmp.lt.s32.totalorder %v428, %v508
    %vm562 = vcmp.lt.s32.totalorder %v429, %v508
    %vm563 = vcmp.lt.s32.totalorder %v430, %v508
    %vm564 = vcmp.lt.s32.totalorder %v431, %v508
    %vm565 = vcmp.lt.s32.totalorder %v432, %v508
    %vm566 = vcmp.lt.s32.totalorder %v433, %v508
    %vm567 = vcmp.lt.s32.totalorder %v434, %v508
    %vm568 = vcmp.lt.s32.totalorder %v435, %v508
    %vm569 = vcmp.lt.s32.totalorder %v436, %v508
    %vm570 = vcmp.lt.s32.totalorder %v437, %v508
    %vm571 = vcmp.lt.s32.totalorder %v438, %v508
    %vm572 = vcmp.lt.s32.totalorder %v439, %v508
    %vm573 = vmand %vm443, %vm509
    %vm574 = vmand %vm444, %vm510
    %vm575 = vmand %vm445, %vm511
    %vm576 = vmand %vm446, %vm512
    %vm577 = vmand %vm447, %vm513
    %vm578 = vmand %vm448, %vm514
    %vm579 = vmand %vm449, %vm515
    %vm580 = vmand %vm450, %vm516
    %vm581 = vmand %vm451, %vm517
    %vm582 = vmand %vm452, %vm518
    %vm583 = vmand %vm453, %vm519
    %vm584 = vmand %vm454, %vm520
    %vm585 = vmand %vm455, %vm521
    %vm586 = vmand %vm456, %vm522
    %vm587 = vmand %vm457, %vm523
    %vm588 = vmand %vm458, %vm524
    %vm589 = vmand %vm459, %vm525
    %vm590 = vmand %vm460, %vm526
    %vm591 = vmand %vm461, %vm527
    %vm592 = vmand %vm462, %vm528
    %vm593 = vmand %vm463, %vm529
    %vm594 = vmand %vm464, %vm530
    %vm595 = vmand %vm465, %vm531
    %vm596 = vmand %vm466, %vm532
    %vm597 = vmand %vm467, %vm533
    %vm598 = vmand %vm468, %vm534
    %vm599 = vmand %vm469, %vm535
    %vm600 = vmand %vm470, %vm536
    %vm601 = vmand %vm471, %vm537
    %vm602 = vmand %vm472, %vm538
    %vm603 = vmand %vm473, %vm539
    %vm604 = vmand %vm474, %vm540
    %vm605 = vmand %vm475, %vm541
    %vm606 = vmand %vm476, %vm542
    %vm607 = vmand %vm477, %vm543
    %vm608 = vmand %vm478, %vm544
    %vm609 = vmand %vm479, %vm545
    %vm610 = vmand %vm480, %vm546
    %vm611 = vmand %vm481, %vm547
    %vm612 = vmand %vm482, %vm548
    %vm613 = vmand %vm483, %vm549
    %vm614 = vmand %vm484, %vm550
    %vm615 = vmand %vm485, %vm551
    %vm616 = vmand %vm486, %vm552
    %vm617 = vmand %vm487, %vm553
    %vm618 = vmand %vm488, %vm554
    %vm619 = vmand %vm489, %vm555
    %vm620 = vmand %vm490, %vm556
    %vm621 = vmand %vm491, %vm557
    %vm622 = vmand %vm492, %vm558
    %vm623 = vmand %vm493, %vm559
    %vm624 = vmand %vm494, %vm560
    %vm625 = vmand %vm495, %vm561
    %vm626 = vmand %vm496, %vm562
    %vm627 = vmand %vm497, %vm563
    %vm628 = vmand %vm498, %vm564
    %vm629 = vmand %vm499, %vm565
    %vm630 = vmand %vm500, %vm566
    %vm631 = vmand %vm501, %vm567
    %vm632 = vmand %vm502, %vm568
    %vm633 = vmand %vm503, %vm569
    %vm634 = vmand %vm504, %vm570
    %vm635 = vmand %vm505, %vm571
    %vm636 = vmand %vm506, %vm572
    %v637 = vsel %vm573, 1, 0
    %v638 = vsel %vm574, 1, 0
    %v639 = vsel %vm575, 1, 0
    %v640 = vsel %vm576, 1, 0
    %v641 = vsel %vm577, 1, 0
    %v642 = vsel %vm578, 1, 0
    %v643 = vsel %vm579, 1, 0
    %v644 = vsel %vm580, 1, 0
    %v645 = vsel %vm581, 1, 0
    %v646 = vsel %vm582, 1, 0
    %v647 = vsel %vm583, 1, 0
    %v648 = vsel %vm584, 1, 0
    %v649 = vsel %vm585, 1, 0
    %v650 = vsel %vm586, 1, 0
    %v651 = vsel %vm587, 1, 0
    %v652 = vsel %vm588, 1, 0
    %v653 = vsel %vm589, 1, 0
    %v654 = vsel %vm590, 1, 0
    %v655 = vsel %vm591, 1, 0
    %v656 = vsel %vm592, 1, 0
    %v657 = vsel %vm593, 1, 0
    %v658 = vsel %vm594, 1, 0
    %v659 = vsel %vm595, 1, 0
    %v660 = vsel %vm596, 1, 0
    %v661 = vsel %vm597, 1, 0
    %v662 = vsel %vm598, 1, 0
    %v663 = vsel %vm599, 1, 0
    %v664 = vsel %vm600, 1, 0
    %v665 = vsel %vm601, 1, 0
    %v666 = vsel %vm602, 1, 0
    %v667 = vsel %vm603, 1, 0
    %v668 = vsel %vm604, 1, 0
    %v669 = vsel %vm605, 1, 0
    %v670 = vsel %vm606, 1, 0
    %v671 = vsel %vm607, 1, 0
    %v672 = vsel %vm608, 1, 0
    %v673 = vsel %vm609, 1, 0
    %v674 = vsel %vm610, 1, 0
    %v675 = vsel %vm611, 1, 0
    %v676 = vsel %vm612, 1, 0
    %v677 = vsel %vm613, 1, 0
    %v678 = vsel %vm614, 1, 0
    %v679 = vsel %vm615, 1, 0
    %v680 = vsel %vm616, 1, 0
    %v681 = vsel %vm617, 1, 0
    %v682 = vsel %vm618, 1, 0
    %v683 = vsel %vm619, 1, 0
    %v684 = vsel %vm620, 1, 0
    %v685 = vsel %vm621, 1, 0
    %v686 = vsel %vm622, 1, 0
    %v687 = vsel %vm623, 1, 0
    %v688 = vsel %vm624, 1, 0
    %v689 = vsel %vm625, 1, 0
    %v690 = vsel %vm626, 1, 0
    %v691 = vsel %vm627, 1, 0
    %v692 = vsel %vm628, 1, 0
    %v693 = vsel %vm629, 1, 0
    %v694 = vsel %vm630, 1, 0
    %v695 = vsel %vm631, 1, 0
    %v696 = vsel %vm632, 1, 0
    %v697 = vsel %vm633, 1, 0
    %v698 = vsel %vm634, 1, 0
    %v699 = vsel %vm635, 1, 0
    %v700 = vsel %vm636, 1, 0
    %v701 = vcvt.s32.f32 %v637
    %v702 = vcvt.s32.f32 %v638
    %v703 = vcvt.s32.f32 %v639
    %v704 = vcvt.s32.f32 %v640
    %v705 = vcvt.s32.f32 %v641
    %v706 = vcvt.s32.f32 %v642
    %v707 = vcvt.s32.f32 %v643
    %v708 = vcvt.s32.f32 %v644
    %v709 = vcvt.s32.f32 %v645
    %v710 = vcvt.s32.f32 %v646
    %v711 = vcvt.s32.f32 %v647
    %v712 = vcvt.s32.f32 %v648
    %v713 = vcvt.s32.f32 %v649
    %v714 = vcvt.s32.f32 %v650
    %v715 = vcvt.s32.f32 %v651
    %v716 = vcvt.s32.f32 %v652
    %v717 = vcvt.s32.f32 %v653
    %v718 = vcvt.s32.f32 %v654
    %v719 = vcvt.s32.f32 %v655
    %v720 = vcvt.s32.f32 %v656
    %v721 = vcvt.s32.f32 %v657
    %v722 = vcvt.s32.f32 %v658
    %v723 = vcvt.s32.f32 %v659
    %v724 = vcvt.s32.f32 %v660
    %v725 = vcvt.s32.f32 %v661
    %v726 = vcvt.s32.f32 %v662
    %v727 = vcvt.s32.f32 %v663
    %v728 = vcvt.s32.f32 %v664
    %v729 = vcvt.s32.f32 %v665
    %v730 = vcvt.s32.f32 %v666
    %v731 = vcvt.s32.f32 %v667
    %v732 = vcvt.s32.f32 %v668
    %v733 = vcvt.s32.f32 %v669
    %v734 = vcvt.s32.f32 %v670
    %v735 = vcvt.s32.f32 %v671
    %v736 = vcvt.s32.f32 %v672
    %v737 = vcvt.s32.f32 %v673
    %v738 = vcvt.s32.f32 %v674
    %v739 = vcvt.s32.f32 %v675
    %v740 = vcvt.s32.f32 %v676
    %v741 = vcvt.s32.f32 %v677
    %v742 = vcvt.s32.f32 %v678
    %v743 = vcvt.s32.f32 %v679
    %v744 = vcvt.s32.f32 %v680
    %v745 = vcvt.s32.f32 %v681
    %v746 = vcvt.s32.f32 %v682
    %v747 = vcvt.s32.f32 %v683
    %v748 = vcvt.s32.f32 %v684
    %v749 = vcvt.s32.f32 %v685
    %v750 = vcvt.s32.f32 %v686
    %v751 = vcvt.s32.f32 %v687
    %v752 = vcvt.s32.f32 %v688
    %v753 = vcvt.s32.f32 %v689
    %v754 = vcvt.s32.f32 %v690
    %v755 = vcvt.s32.f32 %v691
    %v756 = vcvt.s32.f32 %v692
    %v757 = vcvt.s32.f32 %v693
    %v758 = vcvt.s32.f32 %v694
    %v759 = vcvt.s32.f32 %v695
    %v760 = vcvt.s32.f32 %v696
    %v761 = vcvt.s32.f32 %v697
    %v762 = vcvt.s32.f32 %v698
    %v763 = vcvt.s32.f32 %v699
    %v764 = vcvt.s32.f32 %v700
    %765 = vmatprep.subr.mxu0 0.0
    %766 = vmatpush1.msra.mxu0 %v701
    %767 = vmatprep.subr.mxu0 0.0
    %768 = vmatpush1.msra.mxu0 %v702
    %769 = vmatprep.subr.mxu0 0.0
    %770 = vmatpush1.msra.mxu0 %v703
    %771 = vmatprep.subr.mxu0 0.0
    %772 = vmatpush1.msra.mxu0 %v704
    %773 = vmatprep.subr.mxu0 0.0
    %774 = vmatpush1.msra.mxu0 %v705
    %775 = vmatprep.subr.mxu0 0.0
    %776 = vmatpush1.msra.mxu0 %v706
    %777 = vmatprep.subr.mxu0 0.0
    %778 = vmatpush1.msra.mxu0 %v707
    %779 = vmatprep.subr.mxu0 0.0
    %780 = vmatpush1.msra.mxu0 %v708
    %781 = vmatprep.subr.mxu0 0.0
    %782 = vmatpush1.msra.mxu0 %v709
    %783 = vmatprep.subr.mxu0 0.0
    %784 = vmatpush1.msra.mxu0 %v710
    %785 = vmatprep.subr.mxu0 0.0
    %786 = vmatpush1.msra.mxu0 %v711
    %787 = vmatprep.subr.mxu0 0.0
    %788 = vmatpush1.msra.mxu0 %v712
    %789 = vmatprep.subr.mxu0 0.0
    %790 = vmatpush1.msra.mxu0 %v713
    %791 = vmatprep.subr.mxu0 0.0
    %792 = vmatpush1.msra.mxu0 %v714
    %793 = vmatprep.subr.mxu0 0.0
    %794 = vmatpush1.msra.mxu0 %v715
    %795 = vmatprep.subr.mxu0 0.0
    %796 = vmatpush1.msra.mxu0 %v716
    %797 = vmatprep.subr.mxu0 0.0
    %798 = vmatpush1.msra.mxu0 %v717
    %799 = vmatprep.subr.mxu0 0.0
    %800 = vmatpush1.msra.mxu0 %v718
    %801 = vmatprep.subr.mxu0 0.0
    %802 = vmatpush1.msra.mxu0 %v719
    %803 = vmatprep.subr.mxu0 0.0
    %804 = vmatpush1.msra.mxu0 %v720
    %805 = vmatprep.subr.mxu0 0.0
    %806 = vmatpush1.msra.mxu0 %v721
    %807 = vmatprep.subr.mxu0 0.0
    %808 = vmatpush1.msra.mxu0 %v722
    %809 = vmatprep.subr.mxu0 0.0
    %810 = vmatpush1.msra.mxu0 %v723
    %811 = vmatprep.subr.mxu0 0.0
    %812 = vmatpush1.msra.mxu0 %v724
    %813 = vmatprep.subr.mxu0 0.0
    %814 = vmatpush1.msra.mxu0 %v725
    %815 = vmatprep.subr.mxu0 0.0
    %816 = vmatpush1.msra.mxu0 %v726
    %817 = vmatprep.subr.mxu0 0.0
    %818 = vmatpush1.msra.mxu0 %v727
    %819 = vmatprep.subr.mxu0 0.0
    %820 = vmatpush1.msra.mxu0 %v728
    %821 = vmatprep.subr.mxu0 0.0
    %822 = vmatpush1.msra.mxu0 %v729
    %823 = vmatprep.subr.mxu0 0.0
    %824 = vmatpush1.msra.mxu0 %v730
    %825 = vmatprep.subr.mxu0 0.0
    %826 = vmatpush1.msra.mxu0 %v731
    %827 = vmatprep.subr.mxu0 0.0
    %828 = vmatpush1.msra.mxu0 %v732
    %829 = vmatprep.mubr.f32.mxu0 %v344
    %830 = vmatmul.mubr.f32.gmra.mrb[0].mxu0 %v343
    %v831 = vpop.f32.mrb[0].mxu0
    %v832 = vadd.f32 0.0, %v831
    %v833 = vpop.f32.mrb[0].mxu0
    %834 = vmatprep.mubr.f32.mxu0 %v348
    %835 = vmatmul.mubr.f32.gmra.mrb[0].mxu0 %v347
    %v836 = vpop.f32.mrb[0].mxu0
    %v837 = vadd.f32 0.0, %v836
    %v838 = vpop.f32.mrb[0].mxu0
    %839 = vmatprep.mubr.f32.mxu0 %v352
    %840 = vmatmul.mubr.f32.gmra.mrb[0].mxu0 %v351
    %v841 = vpop.f32.mrb[0].mxu0
    %v842 = vadd.f32 0.0, %v841
    %v843 = vpop.f32.mrb[0].mxu0
    %844 = vmatprep.mubr.f32.mxu0 %v356
    %845 = vmatmul.mubr.f32.gmra.mrb[0].mxu0 %v355
    %v846 = vpop.f32.mrb[0].mxu0
    %v847 = vadd.f32 0.0, %v846
    %v848 = vpop.f32.mrb[0].mxu0
    %849 = vmatprep.mubr.f32.mxu0 %v360
    %850 = vmatmul.mubr.f32.gmra.mrb[0].mxu0 %v359
    %v851 = vpop.f32.mrb[0].mxu0
    %v852 = vadd.f32 0.0, %v851
    %v853 = vpop.f32.mrb[0].mxu0
    %854 = vmatprep.mubr.f32.mxu0 %v364
    %855 = vmatmul.mubr.f32.gmra.mrb[0].mxu0 %v363
    %v856 = vpop.f32.mrb[0].mxu0
    %v857 = vadd.f32 0.0, %v856
    %v858 = vpop.f32.mrb[0].mxu0
    %859 = vmatprep.mubr.f32.mxu0 %v368
    %860 = vmatmul.mubr.f32.gmra.mrb[0].mxu0 %v367
    %v861 = vpop.f32.mrb[0].mxu0
    %v862 = vadd.f32 0.0, %v861
    %v863 = vpop.f32.mrb[0].mxu0
    %864 = vmatprep.mubr.f32.mxu0 %v372
    %865 = vmatmul.mubr.f32.gmra.mrb[0].mxu0 %v371
    %v866 = vpop.f32.mrb[0].mxu0
    %v867 = vadd.f32 0.0, %v866
    %v868 = vpop.f32.mrb[0].mxu0
    %869 = vdwg.mxu0
    %870 = vmatprep.subr.mxu0 0.0
    %871 = vmatpush1.msra.mxu0 %v733
    %872 = vmatprep.subr.mxu0 0.0
    %873 = vmatpush1.msra.mxu0 %v734
    %874 = vmatprep.subr.mxu0 0.0
    %875 = vmatpush1.msra.mxu0 %v735
    %876 = vmatprep.subr.mxu0 0.0
    %877 = vmatpush1.msra.mxu0 %v736
    %878 = vmatprep.subr.mxu0 0.0
    %879 = vmatpush1.msra.mxu0 %v737
    %880 = vmatprep.subr.mxu0 0.0
    %881 = vmatpush1.msra.mxu0 %v738
    %882 = vmatprep.subr.mxu0 0.0
    %883 = vmatpush1.msra.mxu0 %v739
    %884 = vmatprep.subr.mxu0 0.0
    %885 = vmatpush1.msra.mxu0 %v740
    %886 = vmatprep.subr.mxu0 0.0
    %887 = vmatpush1.msra.mxu0 %v741
    %888 = vmatprep.subr.mxu0 0.0
    %889 = vmatpush1.msra.mxu0 %v742
    %890 = vmatprep.subr.mxu0 0.0
    %891 = vmatpush1.msra.mxu0 %v743
    %892 = vmatprep.subr.mxu0 0.0
    %893 = vmatpush1.msra.mxu0 %v744
    %894 = vmatprep.subr.mxu0 0.0
    %895 = vmatpush1.msra.mxu0 %v745
    %896 = vmatprep.subr.mxu0 0.0
    %897 = vmatpush1.msra.mxu0 %v746
    %898 = vmatprep.subr.mxu0 0.0
    %899 = vmatpush1.msra.mxu0 %v747
    %900 = vmatprep.subr.mxu0 0.0
    %901 = vmatpush1.msra.mxu0 %v748
    %902 = vmatprep.subr.mxu0 0.0
    %903 = vmatpush1.msra.mxu0 %v749
    %904 = vmatprep.subr.mxu0 0.0
    %905 = vmatpush1.msra.mxu0 %v750
    %906 = vmatprep.subr.mxu0 0.0
    %907 = vmatpush1.msra.mxu0 %v751
    %908 = vmatprep.subr.mxu0 0.0
    %909 = vmatpush1.msra.mxu0 %v752
    %910 = vmatprep.subr.mxu0 0.0
    %911 = vmatpush1.msra.mxu0 %v753
    %912 = vmatprep.subr.mxu0 0.0
    %913 = vmatpush1.msra.mxu0 %v754
    %914 = vmatprep.subr.mxu0 0.0
    %915 = vmatpush1.msra.mxu0 %v755
    %916 = vmatprep.subr.mxu0 0.0
    %917 = vmatpush1.msra.mxu0 %v756
    %918 = vmatprep.subr.mxu0 0.0
    %919 = vmatpush1.msra.mxu0 %v757
    %920 = vmatprep.subr.mxu0 0.0
    %921 = vmatpush1.msra.mxu0 %v758
    %922 = vmatprep.subr.mxu0 0.0
    %923 = vmatpush1.msra.mxu0 %v759
    %924 = vmatprep.subr.mxu0 0.0
    %925 = vmatpush1.msra.mxu0 %v760
    %926 = vmatprep.subr.mxu0 0.0
    %927 = vmatpush1.msra.mxu0 %v761
    %928 = vmatprep.subr.mxu0 0.0
    %929 = vmatpush1.msra.mxu0 %v762
    %930 = vmatprep.subr.mxu0 0.0
    %931 = vmatpush1.msra.mxu0 %v763
    %932 = vmatprep.subr.mxu0 0.0
    %933 = vmatpush1.msra.mxu0 %v764
    %934 = vmatprep.mubr.f32.mxu0 %v346
    %935 = vmatmul.mubr.f32.gmra.mrb[0].mxu0 %v345
    %v936 = vpop.f32.mrb[0].mxu0
    %v937 = vadd.f32 %v832, %v936
    %v938 = vpop.f32.mrb[0].mxu0
    %939 = vmatprep.mubr.f32.mxu0 %v350
    %940 = vmatmul.mubr.f32.gmra.mrb[0].mxu0 %v349
    %v941 = vpop.f32.mrb[0].mxu0
    %v942 = vadd.f32 %v837, %v941
    %v943 = vpop.f32.mrb[0].mxu0
    %944 = vmatprep.mubr.f32.mxu0 %v354
    %945 = vmatmul.mubr.f32.gmra.mrb[0].mxu0 %v353
    %v946 = vpop.f32.mrb[0].mxu0
    %v947 = vadd.f32 %v842, %v946
    %v948 = vpop.f32.mrb[0].mxu0
    %949 = vmatprep.mubr.f32.mxu0 %v358
    %950 = vmatmul.mubr.f32.gmra.mrb[0].mxu0 %v357
    %v951 = vpop.f32.mrb[0].mxu0
    %v952 = vadd.f32 %v847, %v951
    %v953 = vpop.f32.mrb[0].mxu0
    %954 = vmatprep.mubr.f32.mxu0 %v362
    %955 = vmatmul.mubr.f32.gmra.mrb[0].mxu0 %v361
    %v956 = vpop.f32.mrb[0].mxu0
    %v957 = vadd.f32 %v852, %v956
    %v958 = vpop.f32.mrb[0].mxu0
    %959 = vmatprep.mubr.f32.mxu0 %v366
    %960 = vmatmul.mubr.f32.gmra.mrb[0].mxu0 %v365
    %v961 = vpop.f32.mrb[0].mxu0
    %v962 = vadd.f32 %v857, %v961
    %v963 = vpop.f32.mrb[0].mxu0
    %964 = vmatprep.mubr.f32.mxu0 %v370
    %965 = vmatmul.mubr.f32.gmra.mrb[0].mxu0 %v369
    %v966 = vpop.f32.mrb[0].mxu0
    %v967 = vadd.f32 %v862, %v966
    %v968 = vpop.f32.mrb[0].mxu0
    %969 = vmatprep.mubr.f32.mxu0 %v374
    %970 = vmatmul.mubr.f32.gmra.mrb[0].mxu0 %v373
    %v971 = vpop.f32.mrb[0].mxu0
    %v972 = vadd.f32 %v867, %v971
    %v973 = vpop.f32.mrb[0].mxu0
    %974 = vdwg.mxu0
    %v975 = vld [vmem:[%s3] sm:$0xff]
    %v976 = vld [vmem:[%s3 + $0x8] sm:$0xff]
    %v977 = vld [vmem:[%s3 + $0x10] sm:$0xff]
    %v978 = vld [vmem:[%s3 + $0x18] sm:$0xff]
    %v979 = vld [vmem:[%s3 + $0x20] sm:$0xff]
    %v980 = vld [vmem:[%s3 + $0x28] sm:$0xff]
    %v981 = vld [vmem:[%s3 + $0x30] sm:$0xff]
    %v982 = vld [vmem:[%s3 + $0x38] sm:$0xff]
    %v983 = vld [vmem:[%s4] sm:$0x1]
    %v985 = vlaneseq
    %v986 = vshrl.u32 %v985, 7
    %v987 = vsub.s32 0, %v986
    %v988 = vrot.slane %v983, %v987
    %990 = vxpose.xlu0.b32.start [1/16] %v937, 128
    %991 = vxpose.xlu0.b32.cont [2/16] %v942, 128
    %992 = vxpose.xlu0.b32.cont [3/16] %v947, 128
    %993 = vxpose.xlu0.b32.cont [4/16] %v952, 128
    %994 = vxpose.xlu0.b32.cont [5/16] %v957, 128
    %995 = vxpose.xlu0.b32.cont [6/16] %v962, 128
    %996 = vxpose.xlu0.b32.cont [7/16] %v967, 128
    %997 = vxpose.xlu0.b32.cont [8/16] %v972, 128
    %998 = vxpose.xlu0.b32.cont [9/16] 0.0, 128
    %999 = vxpose.xlu0.b32.cont [10/16] 0.0, 128
    %1000 = vxpose.xlu0.b32.cont [11/16] 0.0, 128
    %1001 = vxpose.xlu0.b32.cont [12/16] 0.0, 128
    %1002 = vxpose.xlu0.b32.cont [13/16] 0.0, 128
    %1003 = vxpose.xlu0.b32.cont [14/16] 0.0, 128
    %1004 = vxpose.xlu0.b32.cont [15/16] 0.0, 128
    %1005 = vxpose.xlu0.b32.end [16/16] 0.0, 128
    %v1006 = vpop.trf.xlu0
    %v1007 = vpop.trf.xlu0
    %v1008 = vpop.trf.xlu0
    %v1009 = vpop.trf.xlu0
    %v1010 = vpop.trf.xlu0
    %v1011 = vpop.trf.xlu0
    %v1012 = vpop.trf.xlu0
    %v1013 = vpop.trf.xlu0
    %v1014 = vpop.trf.xlu0
    %v1015 = vpop.trf.xlu0
    %v1016 = vpop.trf.xlu0
    %v1017 = vpop.trf.xlu0
    %v1018 = vpop.trf.xlu0
    %v1019 = vpop.trf.xlu0
    %v1020 = vpop.trf.xlu0
    %v1021 = vpop.trf.xlu0
    %vm1022 = vcmask 523264
    %v1024 = vsel %vm1022, %v1006, 0
    %1026 = vmatprep.subr.mxu0 0.0
    %1027 = vmatpush1.msra.mxu0 %v975
    %1028 = vmatprep.subr.mxu0 0.0
    %1029 = vmatpush1.msra.mxu0 %v976
    %1030 = vmatprep.subr.mxu0 0.0
    %1031 = vmatpush1.msra.mxu0 %v977
    %1032 = vmatprep.subr.mxu0 0.0
    %1033 = vmatpush1.msra.mxu0 %v978
    %1034 = vmatprep.subr.mxu0 0.0
    %1035 = vmatpush1.msra.mxu0 %v979
    %1036 = vmatprep.subr.mxu0 0.0
    %1037 = vmatpush1.msra.mxu0 %v980
    %1038 = vmatprep.subr.mxu0 0.0
    %1039 = vmatpush1.msra.mxu0 %v981
    %1040 = vmatprep.subr.mxu0 0.0
    %1041 = vmatpush1.msra.mxu0 %v982
    %1042 = vmatprep.subr.mxu0 0.0
    %1043 = vmatpush1.msra.mxu0 0.0
    %1044 = vmatprep.subr.mxu0 0.0
    %1045 = vmatpush1.msra.mxu0 0.0
    %1046 = vmatprep.subr.mxu0 0.0
    %1047 = vmatpush1.msra.mxu0 0.0
    %1048 = vmatprep.subr.mxu0 0.0
    %1049 = vmatpush1.msra.mxu0 0.0
    %1050 = vmatprep.subr.mxu0 0.0
    %1051 = vmatpush1.msra.mxu0 0.0
    %1052 = vmatprep.subr.mxu0 0.0
    %1053 = vmatpush1.msra.mxu0 0.0
    %1054 = vmatprep.subr.mxu0 0.0
    %1055 = vmatpush1.msra.mxu0 0.0
    %1056 = vmatprep.subr.mxu0 0.0
    %1057 = vmatpush1.msra.mxu0 0.0
    %1058 = vmatprep.subr.mxu0 0.0
    %1059 = vmatpush1.msra.mxu0 0.0
    %1060 = vmatprep.subr.mxu0 0.0
    %1061 = vmatpush1.msra.mxu0 0.0
    %1062 = vmatprep.subr.mxu0 0.0
    %1063 = vmatpush1.msra.mxu0 0.0
    %1064 = vmatprep.subr.mxu0 0.0
    %1065 = vmatpush1.msra.mxu0 0.0
    %1066 = vmatprep.subr.mxu0 0.0
    %1067 = vmatpush1.msra.mxu0 0.0
    %1068 = vmatprep.subr.mxu0 0.0
    %1069 = vmatpush1.msra.mxu0 0.0
    %1070 = vmatprep.subr.mxu0 0.0
    %1071 = vmatpush1.msra.mxu0 0.0
    %1072 = vmatprep.subr.mxu0 0.0
    %1073 = vmatpush1.msra.mxu0 0.0
    %1074 = vmatprep.subr.mxu0 0.0
    %1075 = vmatpush1.msra.mxu0 0.0
    %1076 = vmatprep.subr.mxu0 0.0
    %1077 = vmatpush1.msra.mxu0 0.0
    %1078 = vmatprep.subr.mxu0 0.0
    %1079 = vmatpush1.msra.mxu0 0.0
    %1080 = vmatprep.subr.mxu0 0.0
    %1081 = vmatpush1.msra.mxu0 0.0
    %1082 = vmatprep.subr.mxu0 0.0
    %1083 = vmatpush1.msra.mxu0 0.0
    %1084 = vmatprep.subr.mxu0 0.0
    %1085 = vmatpush1.msra.mxu0 0.0
    %1086 = vmatprep.subr.mxu0 0.0
    %1087 = vmatpush1.msra.mxu0 0.0
    %1088 = vmatprep.subr.mxu0 0.0
    %1089 = vmatpush1.msra.mxu0 0.0
    %1090 = vmatprep.mubr.f32.mxu0 0.0
    %1091 = vmatmul.mubr.f32.gmra.mrb[0].mxu0 %v1024
    %v1092 = vpop.f32.mrb[0].mxu0
    %v1093 = vadd.f32 %v988, %v1092
    %v1094 = vpop.f32.mrb[0].mxu0
    %1095 = vdwg.mxu0
    %vm1096 = vcmask 1041408
    %v1097 = vsel %vm1096, %v1093, -inf
    %1098 = vmax.xlane.f32.xlu0 %v1097
    %v1099 = vpop.xlane.xlu0 %1098
    %v1100 = vsub.f32 %v1093, %v1099
    %v1101 = vmul.f32 %v1100, 1.442695
    %v1102 = vpow.pop %v1101
    %v1103 = vsel %vm1096, %v1102, 0.0
    %1104 = vadd.xlane.f32.xlu0 %v1103
    %v1105 = vpop.xlane.xlu0 %1104
    %v1106 = vlog2.pop %v1105
    %v1107 = vmul.f32 %v1106, 0.6931472
    %v1108 = vsub.f32 %v1100, %v1107
    %1109 = vst [vmem:[#allocation2] sm:$0x3] %v1108
    // Predicated region
    $region22: #{transfer_forward.1} parent=1 // pred_check
      _
    $region23: #{transfer_forward.1} parent=1 // pred_check_branch
      %1111 = sbr.rel (0) target = $region25
    $region24: #{transfer_forward.1} parent=1 // pred_region
      %s1113 = ssub.s32 32, 32
      %1114 = vsyncadd [#allocation3], %s1113
      %s1116 = sshll.u32 [#allocation2], 4
      %s1117 = int_to_ptr.vmem [resolvable:$true] %s1116
      %1119 = dma.vmem_to_hbm [thread:$0]  %s1117, 32, %s5, [#allocation3]
    $region25: #{transfer_forward.1} parent=1 // pred_fallthru
      _
    // Predicated region
    $region26: #{transfer_forward.1} parent=1 // pred_check
      _
    $region27: #{transfer_forward.1} parent=1 // pred_check_branch
      %1121 = sbr.rel (0) target = $region29
    $region28: #{transfer_forward.1} parent=1 // pred_region
      %1122 = dma.done [#allocation3], 32
    $region29: #{transfer_forward.1} parent=1 // pred_fallthru
      _
    %1123 = vsyncpa [#allocation3], 1

</llo_original>
